<compile_context>
chip_gen: v7x
topology: tpu7x:2x2x1
jax: 0.10.0
libtpu: 0.0.40
codegen_flags: <defaults>
</compile_context>

<pallas_src>
import jax
import jax.numpy as jnp
from jax.experimental import pallas as pl
from jax.experimental.pallas import tpu as pltpu


def _encoder_kernel(x_ref, w1_ref, b1_ref, w2_ref, b2_ref, kadj_ref, c_ref,
                    out_ref):
    """One grid step == BB batch elements folded into the GEMM rows.

    Computes (all fused in VMEM, three MXU GEMMs):
      H1      = relu(inputs_flat @ W1 + b1)          # (BB*d, n_hid)
      x       = H1 @ W2 + b2                         # (BB*d, n_out)
      logits  = kron(I_BB, adj_forz) @ x + c         # (BB*d, n_out)
    and stores [x | logits] as one lane-fused slab.
    """
    n_out = c_ref.shape[-1]

    inp = x_ref[...]                                           # (BB*d, n_xdims)
    h1 = jnp.dot(inp, w1_ref[...],
                 preferred_element_type=jnp.float32) + b1_ref[...]
    h1 = jnp.maximum(h1, 0.0)                                  # relu(fc1)
    x = jnp.dot(h1, w2_ref[...],
                preferred_element_type=jnp.float32) + b2_ref[...]

    # Block-diagonal adjacency mixing + folded Wa correction term.
    logits = jnp.dot(kadj_ref[...], x,
                     preferred_element_type=jnp.float32) + c_ref[...]

    out_ref[...] = jnp.concatenate([x, logits], axis=-1)       # single store


def mlp_encoder_forward(inputs, adj_A, W1, b1, W2, b2, Wa, z, z_positive,
                        *, block_batch=None):
    """Pallas-backed forward pass. Returns the same 8-tuple as the torch module:
       (x, logits, adj_A1, adj_A_eye, z, z_positive, adj_A_param, Wa)."""
    B, d, n_xdims = inputs.shape
    n_hid = W1.shape[1]
    n_out = W2.shape[1]

    # ---- batch-independent adjacency math, hoisted out of the kernel ----
    adj_A1 = jnp.sinh(3.0 * adj_A)                              # (d, d)
    adj_forz = jnp.eye(d, dtype=jnp.float32) - adj_A1.T         # preprocess_adj_new
    # Wa fold: adj_forz @ (x + Wa) - Wa == adj_forz @ x + c
    c = (jnp.sum(adj_forz, axis=1, keepdims=True) - 1.0) * Wa.reshape(1, n_out)

    # ---- pick how many batch elements to fold into one grid step ----
    if block_batch is None:
        bb = max(1, min(B, 256 // max(1, d)))   # ~256 rows/GEMM for v6e/v7x MXU
        while (bb * d) % 8 != 0:                # keep row block sublane-aligned
            bb += 1
    else:
        bb = block_batch
    grid_b = pl.cdiv(B, bb)
    B_pad = grid_b * bb
    rows = B_pad * d
    block_rows = bb * d

    # Flatten (B, d, n_xdims) -> (B*d, n_xdims) rows; zero-pad the batch so
    # every grid block is full and in-bounds.
    x_flat = inputs.reshape(B * d, n_xdims)
    if B_pad != B:
        x_flat = jnp.pad(x_flat, ((0, (B_pad - B) * d), (0, 0)))

    kadj = jnp.kron(jnp.eye(bb, dtype=jnp.float32), adj_forz)   # (bb*d, bb*d)
    c_flat = jnp.tile(c, (bb, 1))                               # (bb*d, n_out)

    out_slab = pl.pallas_call(
        _encoder_kernel,
        out_shape=jax.ShapeDtypeStruct((rows, 2 * n_out), jnp.float32),
        grid=(grid_b,),
        in_specs=[
            pl.BlockSpec((block_rows, n_xdims), lambda b: (b, 0)),    # inputs rows
            pl.BlockSpec((n_xdims, n_hid), lambda b: (0, 0)),         # W1
            pl.BlockSpec((1, n_hid), lambda b: (0, 0)),               # b1
            pl.BlockSpec((n_hid, n_out), lambda b: (0, 0)),           # W2
            pl.BlockSpec((1, n_out), lambda b: (0, 0)),               # b2
            pl.BlockSpec((block_rows, block_rows), lambda b: (0, 0)), # kron(I, adj_forz)
            pl.BlockSpec((block_rows, n_out), lambda b: (0, 0)),      # folded Wa term
        ],
        out_specs=pl.BlockSpec((block_rows, 2 * n_out), lambda b: (b, 0)),
        compiler_params=pltpu.CompilerParams(
            dimension_semantics=("parallel",)),   # v7x: shard steps across both TCs
    )(x_flat, W1, b1.reshape(1, n_hid), W2, b2.reshape(1, n_out), kadj, c_flat)

    out_slab = out_slab[: B * d].reshape(B, d, 2 * n_out)
    x = out_slab[..., :n_out]
    logits = out_slab[..., n_out:]

    adj_A_eye = jnp.eye(d, dtype=jnp.float32)   # torch.eye(adj_A1.size()[0])
    return (x, logits, adj_A1, adj_A_eye, z, z_positive, adj_A, Wa)


def _xavier_normal(key, fan_in, fan_out):
    std = (2.0 / (fan_in + fan_out)) ** 0.5
    # Stored as (in, out) so the kernel does x @ W (equivalent to torch (out, in)).
    return std * jax.random.normal(key, (fan_in, fan_out), dtype=jnp.float32)


if __name__ == "__main__":
    # Small shapes consistent with the module.
    B, d, n_xdims, n_hid, n_out = 2, 8, 4, 32, 4
    tol = 0.1

    key = jax.random.PRNGKey(0)
    k_in, k_w1, k_b1, k_w2, k_b2, k_adj, k_wa = jax.random.split(key, 7)

    inputs = jax.random.normal(k_in, (B, d, n_xdims), dtype=jnp.float32)

    # Parameters. The module initializes adj_A from user data and Wa to zeros;
    # here we use small nonzero values so the adjacency / Wa paths are exercised.
    adj_A = 0.1 * jax.random.normal(k_adj, (d, d), dtype=jnp.float32)
    Wa = 0.1 * jax.random.normal(k_wa, (n_out,), dtype=jnp.float32)
    W1 = _xavier_normal(k_w1, n_xdims, n_hid)                 # fc1.weight (xavier_normal_)
    b1 = (1.0 / (n_xdims ** 0.5)) * (
        jax.random.uniform(k_b1, (n_hid,), dtype=jnp.float32) * 2.0 - 1.0)
    W2 = _xavier_normal(k_w2, n_hid, n_out)                   # fc2.weight (xavier_normal_)
    b2 = (1.0 / (n_hid ** 0.5)) * (
        jax.random.uniform(k_b2, (n_out,), dtype=jnp.float32) * 2.0 - 1.0)
    z = jnp.asarray(tol, dtype=jnp.float32)                   # nn.Parameter(torch.tensor(tol))
    z_positive = jnp.ones((d, d), dtype=jnp.float32)          # ones_like(adj_A)

    # rel_rec / rel_send are accepted by the torch forward but never used.
    outs = mlp_encoder_forward(inputs, adj_A, W1, b1, W2, b2, Wa, z, z_positive)
    outs = jax.block_until_ready(outs)

    x, logits, adj_A1, adj_A_eye, z_o, z_pos_o, adj_A_o, Wa_o = outs

    # Pure-JAX reference check of the fused kernel.
    h1_ref = jnp.maximum(jnp.einsum("bdk,kh->bdh", inputs, W1) + b1, 0.0)
    x_ref = jnp.einsum("bdh,ho->bdo", h1_ref, W2) + b2
    adj_A1_ref = jnp.sinh(3.0 * adj_A)
    adj_forz_ref = jnp.eye(d, dtype=jnp.float32) - adj_A1_ref.T
    logits_ref = jnp.einsum("ij,bjo->bio", adj_forz_ref, x_ref + Wa) - Wa

    assert jnp.allclose(x, x_ref, atol=1e-5, rtol=1e-5)
    assert jnp.allclose(logits, logits_ref, atol=1e-5, rtol=1e-5)
    assert jnp.allclose(adj_A1, adj_A1_ref, atol=1e-6)
    assert adj_A_eye.shape == (d, d)

    print("KERNEL_OK")
</pallas_src>

<mosaic_0001>
module attributes {stable_mosaic.version = 11 : i64} {
  func.func @_encoder_kernel(%arg0: i32, %arg1: memref<16x4xf32, #tpu.memory_space<vmem>>, %arg2: memref<4x32xf32, #tpu.memory_space<vmem>>, %arg3: memref<1x32xf32, #tpu.memory_space<vmem>>, %arg4: memref<32x4xf32, #tpu.memory_space<vmem>>, %arg5: memref<1x4xf32, #tpu.memory_space<vmem>>, %arg6: memref<16x16xf32, #tpu.memory_space<vmem>>, %arg7: memref<16x4xf32, #tpu.memory_space<vmem>>, %arg8: memref<16x8xf32, #tpu.memory_space<vmem>>) attributes {dimension_semantics = [#tpu.dimension_semantics<parallel>], iteration_bounds = array<i64: 1>, scalar_prefetch = 0 : i64, scratch_operands = 0 : i64, tpu.core_type = #tpu.core_type<tc>, window_params = [{transform_indices = @transform_0, window_bounds = array<i64: 16, 4>}, {pipeline_mode = #tpu.pipeline_mode<synchronous>, transform_indices = @transform_1, window_bounds = array<i64: 4, 32>}, {pipeline_mode = #tpu.pipeline_mode<synchronous>, transform_indices = @transform_2, window_bounds = array<i64: 1, 32>}, {pipeline_mode = #tpu.pipeline_mode<synchronous>, transform_indices = @transform_3, window_bounds = array<i64: 32, 4>}, {pipeline_mode = #tpu.pipeline_mode<synchronous>, transform_indices = @transform_4, window_bounds = array<i64: 1, 4>}, {pipeline_mode = #tpu.pipeline_mode<synchronous>, transform_indices = @transform_5, window_bounds = array<i64: 16, 16>}, {pipeline_mode = #tpu.pipeline_mode<synchronous>, transform_indices = @transform_6, window_bounds = array<i64: 16, 4>}, {transform_indices = @transform_7, window_bounds = array<i64: 16, 8>}]} {
    %c0 = arith.constant 0 : index
    %c0_0 = arith.constant 0 : index
    %0 = vector.load %arg1[%c0, %c0_0] : memref<16x4xf32, #tpu.memory_space<vmem>>, vector<16x4xf32>
    %c0_1 = arith.constant 0 : index
    %c0_2 = arith.constant 0 : index
    %1 = vector.load %arg2[%c0_1, %c0_2] : memref<4x32xf32, #tpu.memory_space<vmem>>, vector<4x32xf32>
    %cst = arith.constant dense<0.000000e+00> : vector<16x32xf32>
    %2 = tpu.matmul %0, %1, %cst {dimension_numbers = #tpu.dot_dimension_numbers<[1], [0], [0], [1], [0, 0, 1, 1], [], []>} : vector<16x4xf32>, vector<4x32xf32>, vector<16x32xf32> -> vector<16x32xf32>
    %c0_3 = arith.constant 0 : index
    %c0_4 = arith.constant 0 : index
    %3 = vector.load %arg3[%c0_3, %c0_4] : memref<1x32xf32, #tpu.memory_space<vmem>>, vector<1x32xf32>
    %4 = vector.broadcast %3 : vector<1x32xf32> to vector<16x32xf32>
    %5 = arith.addf %2, %4 : vector<16x32xf32>
    %cst_5 = arith.constant 0.000000e+00 : f32
    %6 = vector.broadcast %cst_5 : f32 to vector<16x32xf32>
    %7 = arith.maximumf %5, %6 : vector<16x32xf32>
    %c0_6 = arith.constant 0 : index
    %c0_7 = arith.constant 0 : index
    %8 = vector.load %arg4[%c0_6, %c0_7] : memref<32x4xf32, #tpu.memory_space<vmem>>, vector<32x4xf32>
    %cst_8 = arith.constant dense<0.000000e+00> : vector<16x4xf32>
    %9 = tpu.matmul %7, %8, %cst_8 {dimension_numbers = #tpu.dot_dimension_numbers<[1], [0], [0], [1], [0, 0, 1, 1], [], []>} : vector<16x32xf32>, vector<32x4xf32>, vector<16x4xf32> -> vector<16x4xf32>
    %c0_9 = arith.constant 0 : index
    %c0_10 = arith.constant 0 : index
    %10 = vector.load %arg5[%c0_9, %c0_10] : memref<1x4xf32, #tpu.memory_space<vmem>>, vector<1x4xf32>
    %11 = vector.broadcast %10 : vector<1x4xf32> to vector<16x4xf32>
    %12 = arith.addf %9, %11 : vector<16x4xf32>
    %c0_11 = arith.constant 0 : index
    %c0_12 = arith.constant 0 : index
    %13 = vector.load %arg6[%c0_11, %c0_12] : memref<16x16xf32, #tpu.memory_space<vmem>>, vector<16x16xf32>
    %cst_13 = arith.constant dense<0.000000e+00> : vector<16x4xf32>
    %14 = tpu.matmul %13, %12, %cst_13 {dimension_numbers = #tpu.dot_dimension_numbers<[1], [0], [0], [1], [0, 0, 1, 1], [], []>} : vector<16x16xf32>, vector<16x4xf32>, vector<16x4xf32> -> vector<16x4xf32>
    %c0_14 = arith.constant 0 : index
    %c0_15 = arith.constant 0 : index
    %15 = vector.load %arg7[%c0_14, %c0_15] : memref<16x4xf32, #tpu.memory_space<vmem>>, vector<16x4xf32>
    %16 = arith.addf %14, %15 : vector<16x4xf32>
    %17 = tpu.concatenate %12, %16 in 1 : vector<16x4xf32>, vector<16x4xf32> -> vector<16x8xf32>
    %c0_16 = arith.constant 0 : index
    %c0_17 = arith.constant 0 : index
    %18 = vector.load %arg8[%c0_16, %c0_17] : memref<16x8xf32, #tpu.memory_space<vmem>>, vector<16x8xf32>
    tpu.vector_store %arg8[%c0_16, %c0_17], %17 {strides = array<i32>} : memref<16x8xf32, #tpu.memory_space<vmem>>, vector<16x8xf32>,
    return
  }
  func.func @transform_0(%arg0: i32) -> (i32, i32) {
    %c0_i32 = arith.constant 0 : i32
    %c0_i32_0 = arith.constant 0 : i32
    return %arg0, %c0_i32 : i32, i32
  }
  func.func @transform_1(%arg0: i32) -> (i32, i32) {
    %c0_i32 = arith.constant 0 : i32
    %c0_i32_0 = arith.constant 0 : i32
    %c0_i32_1 = arith.constant 0 : i32
    return %c0_i32, %c0_i32_0 : i32, i32
  }
  func.func @transform_2(%arg0: i32) -> (i32, i32) {
    %c0_i32 = arith.constant 0 : i32
    %c0_i32_0 = arith.constant 0 : i32
    %c0_i32_1 = arith.constant 0 : i32
    return %c0_i32, %c0_i32_0 : i32, i32
  }
  func.func @transform_3(%arg0: i32) -> (i32, i32) {
    %c0_i32 = arith.constant 0 : i32
    %c0_i32_0 = arith.constant 0 : i32
    %c0_i32_1 = arith.constant 0 : i32
    return %c0_i32, %c0_i32_0 : i32, i32
  }
  func.func @transform_4(%arg0: i32) -> (i32, i32) {
    %c0_i32 = arith.constant 0 : i32
    %c0_i32_0 = arith.constant 0 : i32
    %c0_i32_1 = arith.constant 0 : i32
    return %c0_i32, %c0_i32_0 : i32, i32
  }
  func.func @transform_5(%arg0: i32) -> (i32, i32) {
    %c0_i32 = arith.constant 0 : i32
    %c0_i32_0 = arith.constant 0 : i32
    %c0_i32_1 = arith.constant 0 : i32
    return %c0_i32, %c0_i32_0 : i32, i32
  }
  func.func @transform_6(%arg0: i32) -> (i32, i32) {
    %c0_i32 = arith.constant 0 : i32
    %c0_i32_0 = arith.constant 0 : i32
    %c0_i32_1 = arith.constant 0 : i32
    return %c0_i32, %c0_i32_0 : i32, i32
  }
  func.func @transform_7(%arg0: i32) -> (i32, i32) {
    %c0_i32 = arith.constant 0 : i32
    %c0_i32_0 = arith.constant 0 : i32
    return %arg0, %c0_i32 : i32, i32
  }
}

</mosaic_0001>

<llo_original>
// kernel: tpu_custom_call.1
$region0: #{tpu_custom_call.1}
  #allocation0 [shape = 'u32[]', space=smem, size = 0x4, offset = 0x4, fixed_abs, tag = 'smem constant byte address 0x4 - core index']
  #allocation1 [shape = 'u32[144,128]{1,0:T(1,128)}', space=vmem, size = 0x12000, scoped, tag = 'internal scratch']
  %s0 = inlined_call_operand.vmem [shape: f32[16,4], index: 0, kind: input, shape index: {}]
  %s1 = inlined_call_operand.vmem [shape: f32[4,32], index: 1, kind: input, shape index: {}]
  %s2 = inlined_call_operand.vmem [shape: f32[1,32], index: 2, kind: input, shape index: {}]
  %s3 = inlined_call_operand.vmem [shape: f32[32,4], index: 3, kind: input, shape index: {}]
  %s4 = inlined_call_operand.vmem [shape: f32[1,4], index: 4, kind: input, shape index: {}]
  %s5 = inlined_call_operand.vmem [shape: f32[16,16], index: 5, kind: input, shape index: {}]
  %s6 = inlined_call_operand.vmem [shape: f32[16,4], index: 6, kind: input, shape index: {}]
  %s7 = inlined_call_operand.vmem [shape: f32[16,8], index: 7, kind: output, shape index: {}]
  %s8 = sld [smem:[#allocation0]]
  $region38: #{tpu_custom_call.1} parent=0
    _
  %s10 = ssub.s32 1, %s8
  %s11 = scalar_select 0, %s10, %s8
  // Predicated region
  $region2: #{tpu_custom_call.1} parent=0 // pred_check
    _
  $region3: #{tpu_custom_call.1} parent=0 // pred_check_branch
    %13 = sbr.rel (0) target = $region5
  $region4: #{tpu_custom_call.1} parent=0 // pred_region
    _
  $region5: #{tpu_custom_call.1} parent=0 // pred_fallthru
    _
  // Predicated region
  $region6: #{tpu_custom_call.1} parent=0 // pred_check
    _
  $region7: #{tpu_custom_call.1} parent=0 // pred_check_branch
    %15 = sbr.rel (0) target = $region9
  $region8: #{tpu_custom_call.1} parent=0 // pred_region
    _
  $region9: #{tpu_custom_call.1} parent=0 // pred_fallthru
    _
  // Predicated region
  $region10: #{tpu_custom_call.1} parent=0 // pred_check
    _
  $region11: #{tpu_custom_call.1} parent=0 // pred_check_branch
    %17 = sbr.rel (0) target = $region13
  $region12: #{tpu_custom_call.1} parent=0 // pred_region
    _
  $region13: #{tpu_custom_call.1} parent=0 // pred_fallthru
    _
  // Predicated region
  $region14: #{tpu_custom_call.1} parent=0 // pred_check
    _
  $region15: #{tpu_custom_call.1} parent=0 // pred_check_branch
    %19 = sbr.rel (0) target = $region17
  $region16: #{tpu_custom_call.1} parent=0 // pred_region
    _
  $region17: #{tpu_custom_call.1} parent=0 // pred_fallthru
    _
  // Predicated region
  $region18: #{tpu_custom_call.1} parent=0 // pred_check
    _
  $region19: #{tpu_custom_call.1} parent=0 // pred_check_branch
    %21 = sbr.rel (0) target = $region21
  $region20: #{tpu_custom_call.1} parent=0 // pred_region
    _
  $region21: #{tpu_custom_call.1} parent=0 // pred_fallthru
    _
  // Predicated region
  $region22: #{tpu_custom_call.1} parent=0 // pred_check
    _
  $region23: #{tpu_custom_call.1} parent=0 // pred_check_branch
    %23 = sbr.rel (0) target = $region25
  $region24: #{tpu_custom_call.1} parent=0 // pred_region
    _
  $region25: #{tpu_custom_call.1} parent=0 // pred_fallthru
    _
  // Predicated region
  $region26: #{tpu_custom_call.1} parent=0 // pred_check
    _
  $region27: #{tpu_custom_call.1} parent=0 // pred_check_branch
    %25 = sbr.rel (0) target = $region29
  $region28: #{tpu_custom_call.1} parent=0 // pred_region
    _
  $region29: #{tpu_custom_call.1} parent=0 // pred_fallthru
    _
  %v26 = vld [vmem:[%s0] sm:$0xff]
  %v27 = vld [vmem:[%s0 + $0x8] sm:$0xff]
  %v28 = vld [vmem:[%s1] sm:$0xf]
  %v29 = vld [vmem:[%s2] sm:$0x1]
  %v31 = vlaneseq
  %v32 = vshrl.u32 %v31, 7
  %v33 = vsub.s32 0, %v32
  %v34 = vrot.slane %v29, %v33
  %vm36 = vcmask 31744
  %v38 = vsel %vm36, %v26, 0
  %v41 = vsel %vm36, %v27, 0
  %vm43 = vcmask 1043456
  %v45 = vsel %vm43, %v28, 0
  %47 = vmatprep.subr.mxu0 0.0
  %48 = vmatpush1.msra.mxu0 %v45
  %49 = vmatprep.subr.mxu0 0.0
  %50 = vmatpush1.msra.mxu0 0.0
  %51 = vmatprep.subr.mxu0 0.0
  %52 = vmatpush1.msra.mxu0 0.0
  %53 = vmatprep.subr.mxu0 0.0
  %54 = vmatpush1.msra.mxu0 0.0
  %55 = vmatprep.subr.mxu0 0.0
  %56 = vmatpush1.msra.mxu0 0.0
  %57 = vmatprep.subr.mxu0 0.0
  %58 = vmatpush1.msra.mxu0 0.0
  %59 = vmatprep.subr.mxu0 0.0
  %60 = vmatpush1.msra.mxu0 0.0
  %61 = vmatprep.subr.mxu0 0.0
  %62 = vmatpush1.msra.mxu0 0.0
  %63 = vmatprep.subr.mxu0 0.0
  %64 = vmatpush1.msra.mxu0 0.0
  %65 = vmatprep.subr.mxu0 0.0
  %66 = vmatpush1.msra.mxu0 0.0
  %67 = vmatprep.subr.mxu0 0.0
  %68 = vmatpush1.msra.mxu0 0.0
  %69 = vmatprep.subr.mxu0 0.0
  %70 = vmatpush1.msra.mxu0 0.0
  %71 = vmatprep.subr.mxu0 0.0
  %72 = vmatpush1.msra.mxu0 0.0
  %73 = vmatprep.subr.mxu0 0.0
  %74 = vmatpush1.msra.mxu0 0.0
  %75 = vmatprep.subr.mxu0 0.0
  %76 = vmatpush1.msra.mxu0 0.0
  %77 = vmatprep.subr.mxu0 0.0
  %78 = vmatpush1.msra.mxu0 0.0
  %79 = vmatprep.subr.mxu0 0.0
  %80 = vmatpush1.msra.mxu0 0.0
  %81 = vmatprep.subr.mxu0 0.0
  %82 = vmatpush1.msra.mxu0 0.0
  %83 = vmatprep.subr.mxu0 0.0
  %84 = vmatpush1.msra.mxu0 0.0
  %85 = vmatprep.subr.mxu0 0.0
  %86 = vmatpush1.msra.mxu0 0.0
  %87 = vmatprep.subr.mxu0 0.0
  %88 = vmatpush1.msra.mxu0 0.0
  %89 = vmatprep.subr.mxu0 0.0
  %90 = vmatpush1.msra.mxu0 0.0
  %91 = vmatprep.subr.mxu0 0.0
  %92 = vmatpush1.msra.mxu0 0.0
  %93 = vmatprep.subr.mxu0 0.0
  %94 = vmatpush1.msra.mxu0 0.0
  %95 = vmatprep.subr.mxu0 0.0
  %96 = vmatpush1.msra.mxu0 0.0
  %97 = vmatprep.subr.mxu0 0.0
  %98 = vmatpush1.msra.mxu0 0.0
  %99 = vmatprep.subr.mxu0 0.0
  %100 = vmatpush1.msra.mxu0 0.0
  %101 = vmatprep.subr.mxu0 0.0
  %102 = vmatpush1.msra.mxu0 0.0
  %103 = vmatprep.subr.mxu0 0.0
  %104 = vmatpush1.msra.mxu0 0.0
  %105 = vmatprep.subr.mxu0 0.0
  %106 = vmatpush1.msra.mxu0 0.0
  %107 = vmatprep.subr.mxu0 0.0
  %108 = vmatpush1.msra.mxu0 0.0
  %109 = vmatprep.subr.mxu0 0.0
  %110 = vmatpush1.msra.mxu0 0.0
  %111 = vmatprep.mubr.f32.mxu0 0.0
  %112 = vmatmul.mubr.f32.gmra.mrb[0].mxu0 %v38
  %v113 = vpop.f32.mrb[0].mxu0
  %v114 = vadd.f32 %v34, %v113
  %v115 = vpop.f32.mrb[0].mxu0
  %116 = vmatprep.mubr.f32.mxu0 0.0
  %117 = vmatmul.mubr.f32.gmra.mrb[0].mxu0 %v41
  %v118 = vpop.f32.mrb[0].mxu0
  %v119 = vadd.f32 %v34, %v118
  %v120 = vpop.f32.mrb[0].mxu0
  %121 = vdwg.mxu0
  %v122 = vmax.f32 %v114, 0.0
  %v123 = vmax.f32 %v119, 0.0
  %v124 = vld [vmem:[%s3] sm:$0xff]
  %v125 = vld [vmem:[%s3 + $0x8] sm:$0xff]
  %v126 = vld [vmem:[%s3 + $0x10] sm:$0xff]
  %v127 = vld [vmem:[%s3 + $0x18] sm:$0xff]
  %v128 = vld [vmem:[%s4] sm:$0x1]
  %v130 = vlaneseq
  %v131 = vshrl.u32 %v130, 7
  %v132 = vsub.s32 0, %v131
  %v133 = vrot.slane %v128, %v132
  %vm135 = vcmask 261120
  %v137 = vsel %vm135, %v122, 0
  %v140 = vsel %vm135, %v123, 0
  %142 = vmatprep.subr.mxu0 0.0
  %143 = vmatpush1.msra.mxu0 %v124
  %144 = vmatprep.subr.mxu0 0.0
  %145 = vmatpush1.msra.mxu0 %v125
  %146 = vmatprep.subr.mxu0 0.0
  %147 = vmatpush1.msra.mxu0 %v126
  %148 = vmatprep.subr.mxu0 0.0
  %149 = vmatpush1.msra.mxu0 %v127
  %150 = vmatprep.subr.mxu0 0.0
  %151 = vmatpush1.msra.mxu0 0.0
  %152 = vmatprep.subr.mxu0 0.0
  %153 = vmatpush1.msra.mxu0 0.0
  %154 = vmatprep.subr.mxu0 0.0
  %155 = vmatpush1.msra.mxu0 0.0
  %156 = vmatprep.subr.mxu0 0.0
  %157 = vmatpush1.msra.mxu0 0.0
  %158 = vmatprep.subr.mxu0 0.0
  %159 = vmatpush1.msra.mxu0 0.0
  %160 = vmatprep.subr.mxu0 0.0
  %161 = vmatpush1.msra.mxu0 0.0
  %162 = vmatprep.subr.mxu0 0.0
  %163 = vmatpush1.msra.mxu0 0.0
  %164 = vmatprep.subr.mxu0 0.0
  %165 = vmatpush1.msra.mxu0 0.0
  %166 = vmatprep.subr.mxu0 0.0
  %167 = vmatpush1.msra.mxu0 0.0
  %168 = vmatprep.subr.mxu0 0.0
  %169 = vmatpush1.msra.mxu0 0.0
  %170 = vmatprep.subr.mxu0 0.0
  %171 = vmatpush1.msra.mxu0 0.0
  %172 = vmatprep.subr.mxu0 0.0
  %173 = vmatpush1.msra.mxu0 0.0
  %174 = vmatprep.subr.mxu0 0.0
  %175 = vmatpush1.msra.mxu0 0.0
  %176 = vmatprep.subr.mxu0 0.0
  %177 = vmatpush1.msra.mxu0 0.0
  %178 = vmatprep.subr.mxu0 0.0
  %179 = vmatpush1.msra.mxu0 0.0
  %180 = vmatprep.subr.mxu0 0.0
  %181 = vmatpush1.msra.mxu0 0.0
  %182 = vmatprep.subr.mxu0 0.0
  %183 = vmatpush1.msra.mxu0 0.0
  %184 = vmatprep.subr.mxu0 0.0
  %185 = vmatpush1.msra.mxu0 0.0
  %186 = vmatprep.subr.mxu0 0.0
  %187 = vmatpush1.msra.mxu0 0.0
  %188 = vmatprep.subr.mxu0 0.0
  %189 = vmatpush1.msra.mxu0 0.0
  %190 = vmatprep.subr.mxu0 0.0
  %191 = vmatpush1.msra.mxu0 0.0
  %192 = vmatprep.subr.mxu0 0.0
  %193 = vmatpush1.msra.mxu0 0.0
  %194 = vmatprep.subr.mxu0 0.0
  %195 = vmatpush1.msra.mxu0 0.0
  %196 = vmatprep.subr.mxu0 0.0
  %197 = vmatpush1.msra.mxu0 0.0
  %198 = vmatprep.subr.mxu0 0.0
  %199 = vmatpush1.msra.mxu0 0.0
  %200 = vmatprep.subr.mxu0 0.0
  %201 = vmatpush1.msra.mxu0 0.0
  %202 = vmatprep.subr.mxu0 0.0
  %203 = vmatpush1.msra.mxu0 0.0
  %204 = vmatprep.subr.mxu0 0.0
  %205 = vmatpush1.msra.mxu0 0.0
  %206 = vmatprep.mubr.f32.mxu0 0.0
  %207 = vmatmul.mubr.f32.gmra.mrb[0].mxu0 %v137
  %v208 = vpop.f32.mrb[0].mxu0
  %v209 = vadd.f32 %v133, %v208
  %v210 = vpop.f32.mrb[0].mxu0
  %211 = vmatprep.mubr.f32.mxu0 0.0
  %212 = vmatmul.mubr.f32.gmra.mrb[0].mxu0 %v140
  %v213 = vpop.f32.mrb[0].mxu0
  %v214 = vadd.f32 %v133, %v213
  %v215 = vpop.f32.mrb[0].mxu0
  %216 = vdwg.mxu0
  %v217 = vld [vmem:[%s5] sm:$0xff]
  %v218 = vld [vmem:[%s5 + $0x8] sm:$0xff]
  %v219 = vld [vmem:[%s6] sm:$0xff]
  %v220 = vld [vmem:[%s6 + $0x8] sm:$0xff]
  %vm221 = vcmask 130048
  %v223 = vsel %vm221, %v217, 0
  %v226 = vsel %vm221, %v218, 0
  %228 = vmatprep.subr.mxu0 0.0
  %229 = vmatpush1.msra.mxu0 %v209
  %230 = vmatprep.subr.mxu0 0.0
  %231 = vmatpush1.msra.mxu0 %v214
  %232 = vmatprep.subr.mxu0 0.0
  %233 = vmatpush1.msra.mxu0 0.0
  %234 = vmatprep.subr.mxu0 0.0
  %235 = vmatpush1.msra.mxu0 0.0
  %236 = vmatprep.subr.mxu0 0.0
  %237 = vmatpush1.msra.mxu0 0.0
  %238 = vmatprep.subr.mxu0 0.0
  %239 = vmatpush1.msra.mxu0 0.0
  %240 = vmatprep.subr.mxu0 0.0
  %241 = vmatpush1.msra.mxu0 0.0
  %242 = vmatprep.subr.mxu0 0.0
  %243 = vmatpush1.msra.mxu0 0.0
  %244 = vmatprep.subr.mxu0 0.0
  %245 = vmatpush1.msra.mxu0 0.0
  %246 = vmatprep.subr.mxu0 0.0
  %247 = vmatpush1.msra.mxu0 0.0
  %248 = vmatprep.subr.mxu0 0.0
  %249 = vmatpush1.msra.mxu0 0.0
  %250 = vmatprep.subr.mxu0 0.0
  %251 = vmatpush1.msra.mxu0 0.0
  %252 = vmatprep.subr.mxu0 0.0
  %253 = vmatpush1.msra.mxu0 0.0
  %254 = vmatprep.subr.mxu0 0.0
  %255 = vmatpush1.msra.mxu0 0.0
  %256 = vmatprep.subr.mxu0 0.0
  %257 = vmatpush1.msra.mxu0 0.0
  %258 = vmatprep.subr.mxu0 0.0
  %259 = vmatpush1.msra.mxu0 0.0
  %260 = vmatprep.subr.mxu0 0.0
  %261 = vmatpush1.msra.mxu0 0.0
  %262 = vmatprep.subr.mxu0 0.0
  %263 = vmatpush1.msra.mxu0 0.0
  %264 = vmatprep.subr.mxu0 0.0
  %265 = vmatpush1.msra.mxu0 0.0
  %266 = vmatprep.subr.mxu0 0.0
  %267 = vmatpush1.msra.mxu0 0.0
  %268 = vmatprep.subr.mxu0 0.0
  %269 = vmatpush1.msra.mxu0 0.0
  %270 = vmatprep.subr.mxu0 0.0
  %271 = vmatpush1.msra.mxu0 0.0
  %272 = vmatprep.subr.mxu0 0.0
  %273 = vmatpush1.msra.mxu0 0.0
  %274 = vmatprep.subr.mxu0 0.0
  %275 = vmatpush1.msra.mxu0 0.0
  %276 = vmatprep.subr.mxu0 0.0
  %277 = vmatpush1.msra.mxu0 0.0
  %278 = vmatprep.subr.mxu0 0.0
  %279 = vmatpush1.msra.mxu0 0.0
  %280 = vmatprep.subr.mxu0 0.0
  %281 = vmatpush1.msra.mxu0 0.0
  %282 = vmatprep.subr.mxu0 0.0
  %283 = vmatpush1.msra.mxu0 0.0
  %284 = vmatprep.subr.mxu0 0.0
  %285 = vmatpush1.msra.mxu0 0.0
  %286 = vmatprep.subr.mxu0 0.0
  %287 = vmatpush1.msra.mxu0 0.0
  %288 = vmatprep.subr.mxu0 0.0
  %289 = vmatpush1.msra.mxu0 0.0
  %290 = vmatprep.subr.mxu0 0.0
  %291 = vmatpush1.msra.mxu0 0.0
  %292 = vmatprep.mubr.f32.mxu0 0.0
  %293 = vmatmul.mubr.f32.gmra.mrb[0].mxu0 %v223
  %v294 = vpop.f32.mrb[0].mxu0
  %v295 = vadd.f32 %v219, %v294
  %v296 = vpop.f32.mrb[0].mxu0
  %297 = vmatprep.mubr.f32.mxu0 0.0
  %298 = vmatmul.mubr.f32.gmra.mrb[0].mxu0 %v226
  %v299 = vpop.f32.mrb[0].mxu0
  %v300 = vadd.f32 %v220, %v299
  %v301 = vpop.f32.mrb[0].mxu0
  %302 = vdwg.mxu0
  %305 = vrot.lane.b32.xlu0 %v295, 4
  %v306 = vpop.permute.xlu0 %305
  %307 = vrot.lane.b32.xlu0 %v300, 4
  %v308 = vpop.permute.xlu0 %307
  %v311 = vsel %vm36, %v209, %v306
  %v312 = vsel %vm36, %v214, %v308
  %vm313 = vcmask 64512
  %314 = vst.msk [vmem:[%s7] sm:$0xff] %vm313, %v311
  %315 = vst.msk [vmem:[%s7 + $0x8] sm:$0xff] %vm313, %v312
  // Predicated region
  $region30: #{tpu_custom_call.1} parent=0 // pred_check
    _
  $region31: #{tpu_custom_call.1} parent=0 // pred_check_branch
    %317 = sbr.rel (0) target = $region33
  $region32: #{tpu_custom_call.1} parent=0 // pred_region
    _
  $region33: #{tpu_custom_call.1} parent=0 // pred_fallthru
    _
  // Predicated region
  $region34: #{tpu_custom_call.1} parent=0 // pred_check
    _
  $region35: #{tpu_custom_call.1} parent=0 // pred_check_branch
    %319 = sbr.rel (0) target = $region37
  $region36: #{tpu_custom_call.1} parent=0 // pred_region
    _
  $region37: #{tpu_custom_call.1} parent=0 // pred_fallthru
    _

</llo_original>
